<compile_context>
chip_gen: v5e
topology: v5e:2x2
jax: 0.10.0
libtpu: 0.0.40
codegen_flags: <defaults>
</compile_context>

<pallas_src>
import jax
import jax.numpy as jnp
from jax.experimental import pallas as pl
from jax.experimental.pallas import tpu as pltpu


def _temperature_kernel(t_ref, o_ref):
    # forward: x = log(temperature); return exp(x)
    # exp(log(t)) == t for t >= 0 (with exp(log(0)) == 0), NaN for t < 0.
    # Scalar compare + select runs entirely on the scalar core (SMEM path).
    t = t_ref[0, 0]
    o_ref[0, 0] = jnp.where(t >= jnp.float32(0.0), t, jnp.float32(jnp.nan))


def temperature_forward(temperature_scalar: jax.Array) -> jax.Array:
    """Pallas equivalent of Temperature.forward().

    Args:
      temperature_scalar: 0-d (or any 1-element) float32 array holding the
        learnable temperature parameter.
    Returns:
      0-d float32 array equal to exp(log(temperature)).
    """
    t = jnp.asarray(temperature_scalar, dtype=jnp.float32).reshape(1, 1)
    out = pl.pallas_call(
        _temperature_kernel,
        out_shape=jax.ShapeDtypeStruct((1, 1), jnp.float32),
        in_specs=[pl.BlockSpec(memory_space=pltpu.MemorySpace.SMEM)],
        out_specs=pl.BlockSpec(memory_space=pltpu.MemorySpace.SMEM),
    )(t)
    return out.reshape(())


if __name__ == "__main__":
    # Deterministic parameter init (nn.Parameter(torch.tensor(1.0)) analogue,
    # perturbed via PRNG so the round-trip is non-trivial and strictly > 0).
    key = jax.random.PRNGKey(0)
    init_temperature = 1.0 + jax.random.uniform(key, (), dtype=jnp.float32)

    result = temperature_forward(init_temperature)
    jax.block_until_ready(result)

    expected = jnp.exp(jnp.log(init_temperature))
    assert result.shape == ()
    assert jnp.allclose(result, expected, rtol=1e-6, atol=1e-6)

    # Semantics check for the invalid-input branch: exp(log(t)) is NaN for t<0,
    # and the kernel preserves that behavior.
    result_neg = temperature_forward(jnp.float32(-0.5))
    jax.block_until_ready(result_neg)
    assert bool(jnp.isnan(result_neg))

    print("KERNEL_OK")
</pallas_src>

<mosaic_0001>
module attributes {stable_mosaic.version = 11 : i64} {
  func.func @_temperature_kernel(%arg0: memref<1x1xf32, #tpu.memory_space<smem>>, %arg1: memref<1x1xf32, #tpu.memory_space<smem>>) attributes {dimension_semantics = [], scalar_prefetch = 0 : i64, scratch_operands = 0 : i64, tpu.core_type = #tpu.core_type<tc>} {
    %c0 = arith.constant 0 : index
    %c0_0 = arith.constant 0 : index
    %0 = memref.load %arg0[%c0, %c0_0] : memref<1x1xf32, #tpu.memory_space<smem>>
    %cst = arith.constant 0.000000e+00 : f32
    %1 = arith.cmpf oge, %0, %cst : f32
    %cst_1 = arith.constant 0x7FC00000 : f32
    %2 = arith.select %1, %0, %cst_1 : f32
    %c0_2 = arith.constant 0 : index
    %c0_3 = arith.constant 0 : index
    %3 = memref.load %arg1[%c0_2, %c0_3] : memref<1x1xf32, #tpu.memory_space<smem>>
    memref.store %2, %arg1[%c0_2, %c0_3] : memref<1x1xf32, #tpu.memory_space<smem>>
    return
  }
}

</mosaic_0001>

<llo_original>
// kernel: tpu_custom_call.1
$region0: #{tpu_custom_call.1}
  #allocation0 [shape = 'u32[]', space=smem, size = 0x4, offset = 0x4, fixed_abs, tag = 'smem constant byte address 0x4 - core index']
  #allocation1 [shape = 'u32[72,128]{1,0:T(1,128)}', space=vmem, size = 0x9000, scoped, tag = 'internal scratch']
  #allocation2 [shape = 'f32[1,1]{1,0:T(1,128)S(6)}', space=smem, size = 0x200, scoped, tag = 'scoped memory for tpu_custom_call.1']
  %s0 = inlined_call_operand.<no memory space> [shape: f32[1,1], index: 0, kind: input, shape index: {}]
  %s1 = inlined_call_operand.hbm [shape: f32[1,1], index: 1, kind: output, shape index: {}]
  %s2 = sld [smem:[#allocation0]]
  $region14: #{tpu_custom_call.1} parent=0
    _
  %s4 = ssub.s32 1, %s2
  %s5 = scalar_select 0, %s4, %s2
  %6 = sst [smem:[#allocation2]] %s0
  $region1: #{tpu_custom_call.1} parent=0
    #allocation3 [shape = 'u8[512]{0}', space=smem, size = 0x200, scoped, tag = 'output window, operand 0, single buffered']
    #allocation4 [shape = 's32[1]{0}', space=sflag, size = 0x4, scoped, tag = 'scoped memory for tpu_custom_call.1']
    %7 = vsyncpa [#allocation4], 0
    // Predicated region
    $region2: #{tpu_custom_call.1} parent=1 // pred_check
      _
    $region3: #{tpu_custom_call.1} parent=1 // pred_check_branch
      %9 = sbr.rel (0) target = $region5
    $region4: #{tpu_custom_call.1} parent=1 // pred_region
      _
    $region5: #{tpu_custom_call.1} parent=1 // pred_fallthru
      _
    %s10 = sld [smem:[#allocation2]]
    %p11 = scmp.ge.f32.partialorder %s10, 0.0
    %s12 = scalar_select %p11, %s10, nan
    %s13 = scalar_lea.smem [#allocation3], 0
    %14 = sst [smem:[%s13]] %s12
    // Predicated region
    $region6: #{tpu_custom_call.1} parent=1 // pred_check
      _
    $region7: #{tpu_custom_call.1} parent=1 // pred_check_branch
      %16 = sbr.rel (0) target = $region9
    $region8: #{tpu_custom_call.1} parent=1 // pred_region
      %18 = vsyncadd [#allocation4], 0
      %s20 = sshll.u32 %s1, 4
      %s21 = int_to_ptr.hbm [resolvable:$true] %s20
      %23 = dma.smem_to_hbm [#allocation3], 16, %s21, [#allocation4]
    $region9: #{tpu_custom_call.1} parent=1 // pred_fallthru
      _
    // Predicated region
    $region10: #{tpu_custom_call.1} parent=1 // pred_check
      _
    $region11: #{tpu_custom_call.1} parent=1 // pred_check_branch
      %25 = sbr.rel (0) target = $region13
    $region12: #{tpu_custom_call.1} parent=1 // pred_region
      %27 = dma.done [#allocation4], 16
    $region13: #{tpu_custom_call.1} parent=1 // pred_fallthru
      _
    %28 = sfence
    %29 = vsyncpa [#allocation4], 1

</llo_original>
